<compile_context>
chip_gen: v7x
topology: tpu7x:2x2x1
jax: 0.10.0
libtpu: 0.0.40
codegen_flags: <defaults>
</compile_context>

<pallas_src>
import functools

import jax
import jax.numpy as jnp
from jax import lax
from jax.experimental import pallas as pl
from jax.experimental.pallas import tpu as pltpu

CP = 128                 # lane-padded channel width
STRIDES = (5, 3, 2)      # conv strides from the module definition


def _customdense_kernel(lhs_ref, w_ref, b_ref, o_ref, h1_ref, h2_ref, *,
                        n, l1, l2, l3, k2, k3, s2, s3):
    """lhs_ref rows [0, n*l1): conv1 im2col patches (sample-major), lane-padded.
       lhs_ref rows [n*l1, n*l1+n): last-time-step query vectors, lane-padded.
       w_ref: consolidated weights [W1 | Wq | W2_im2col | (W3∘Linear) folded].
       b_ref: row 0 = conv1 bias, row 1 = conv2 bias, row 2 = folded final bias."""
    o_w1, o_wq, o_w2 = 0, CP, 2 * CP
    o_w3 = 2 * CP + k2 * CP

    # ---- conv1: one MXU contraction for all samples (patches built in wrapper)
    h1_ref[...] = (jnp.dot(lhs_ref[0:n * l1, :], w_ref[o_w1:o_w1 + CP, :],
                           preferred_element_type=jnp.float32)
                   + b_ref[0:1, :])                                   # (n*l1, CP)

    # ---- conv2: strided im2col windows read from VMEM scratch, one contraction
    p2 = jnp.concatenate(
        [jnp.concatenate([h1_ref[pl.ds(i * l1 + tap, l2, stride=s2), :]
                          for tap in range(k2)], axis=1)
         for i in range(n)], axis=0)                                  # (n*l2, k2*CP)
    h2_ref[...] = (jnp.dot(p2, w_ref[o_w2:o_w2 + k2 * CP, :],
                           preferred_element_type=jnp.float32)
                   + b_ref[1:2, :])                                   # (n*l2, CP)

    # ---- final Linear: query part + (conv3 ∘ Linear) precomposed weight
    acc = jnp.dot(lhs_ref[n * l1:n * l1 + n, :], w_ref[o_wq:o_wq + CP, :],
                  preferred_element_type=jnp.float32)                 # (n, CP)
    for t in range(l3):                                               # l3 == 1 here
        p3 = jnp.concatenate([h2_ref[pl.ds(t * s3 + tap, n, stride=l2), :]
                              for tap in range(k3)], axis=1)          # (n, k3*CP)
        acc = acc + jnp.dot(
            p3, w_ref[o_w3 + t * k3 * CP:o_w3 + (t + 1) * k3 * CP, :],
            preferred_element_type=jnp.float32)
    o_ref[...] = (acc + b_ref[2:3, :]).astype(o_ref.dtype)


def _derive_dims(params, L):
    (w1, _), (w2, _), (w3, _), (wf, _) = params
    c1, cin, K1 = w1.shape
    c2, _, K2 = w2.shape
    c3, _, K3 = w3.shape
    S1, S2, S3 = STRIDES
    L1 = (L - K1) // S1 + 1
    L2 = (L1 - K2) // S2 + 1
    L3 = (L2 - K3) // S3 + 1
    dout = wf.shape[0]
    assert wf.shape[1] == cin + c3 * L3, "Linear in-features mismatch"
    assert K1 * cin <= CP and c1 <= CP and c2 <= CP and c3 <= CP and dout <= CP
    return dict(cin=cin, c1=c1, c2=c2, c3=c3, K1=K1, K2=K2, K3=K3,
                S1=S1, S2=S2, S3=S3, L=L, L1=L1, L2=L2, L3=L3, dout=dout)


def pack_params(params, L):
    """One-time weight packing (hoisted out of the per-call path)."""
    (w1, b1), (w2, b2), (w3, b3), (wf, bf) = params
    d = _derive_dims(params, L)
    cin, c1, c2, c3 = d["cin"], d["c1"], d["c2"], d["c3"]
    K1, K2, K3, L3, dout = d["K1"], d["K2"], d["K3"], d["L3"], d["dout"]
    f32 = jnp.float32

    # conv1 weight in wrapper-im2col layout (row = tap*cin + c), padded to (CP,CP)
    w1_im = jnp.transpose(w1, (2, 1, 0)).reshape(K1 * cin, c1).astype(f32)
    w1p = jnp.zeros((CP, CP), f32).at[:K1 * cin, :c1].set(w1_im)

    # final-Linear query part (acts on the last-time-step input channels)
    wq = jnp.zeros((CP, CP), f32).at[:cin, :dout].set(wf[:, :cin].T.astype(f32))

    # conv2 im2col weight (row = tap*CP + channel), lane-padded
    w2_t = jnp.transpose(w2, (2, 1, 0)).astype(f32)                    # (K2, c1, c2)
    w2p = (jnp.zeros((K2, CP, CP), f32).at[:, :c1, :c2].set(w2_t)
           .reshape(K2 * CP, CP))

    # conv3 folded with the conv-feature half of the Linear (exact: no nonlinearity)
    w3_t = jnp.transpose(w3, (2, 1, 0)).astype(f32)                    # (K3, c2, c3)
    w3f_blocks, b_fold = [], jnp.zeros((dout,), f32)
    for t in range(L3):
        # torch flatten order of conv output is channel-major, time-minor
        wh_t = wf[:, cin + jnp.arange(c3) * L3 + t].T.astype(f32)      # (c3, dout)
        w3f_t = jnp.einsum("kco,od->kcd", w3_t, wh_t)                  # (K3, c2, dout)
        w3f_blocks.append(jnp.zeros((K3, CP, CP), f32)
                          .at[:, :c2, :dout].set(w3f_t).reshape(K3 * CP, CP))
        b_fold = b_fold + jnp.dot(b3.astype(f32), wh_t)

    w_all = jnp.concatenate([w1p, wq, w2p] + w3f_blocks, axis=0)       # (1792, CP)

    b_all = jnp.zeros((3, CP), f32)
    b_all = b_all.at[0, :c1].set(b1.astype(f32))
    b_all = b_all.at[1, :c2].set(b2.astype(f32))
    b_all = b_all.at[2, :dout].set(b_fold + bf.astype(f32))
    return jax.device_put(w_all), jax.device_put(b_all), d


def make_customdense_forward(params, L):
    """Pack weights once; return forward(x) for x of shape (N, in_ch, L)."""
    w_all, b_all, d = pack_params(params, L)
    cin, K1, S1 = d["cin"], d["K1"], d["S1"]
    K2, K3, S2, S3 = d["K2"], d["K3"], d["S2"], d["S3"]
    L1, L2, L3, dout = d["L1"], d["L2"], d["L3"], d["dout"]
    n_w_rows = 2 * CP + K2 * CP + L3 * K3 * CP

    @jax.jit
    def _fwd(x, w_all, b_all):
        N = x.shape[0]
        assert x.shape[1] == cin and x.shape[2] == d["L"]

        # ---- wrapper-side conv1 im2col on the tiny raw input (per review) ----
        taps = [x[:, :, k:k + (L1 - 1) * S1 + 1:S1] for k in range(K1)]  # (N,cin,L1)
        p1 = jnp.transpose(jnp.stack(taps, axis=1), (0, 3, 1, 2))        # (N,L1,K1,cin)
        p1 = p1.reshape(N, L1, K1 * cin).astype(jnp.float32)
        p1 = jnp.pad(p1, ((0, 0), (0, 0), (0, CP - K1 * cin)))
        p1 = p1.reshape(N * L1, CP)
        xq = jnp.pad(x[:, :, -1].astype(jnp.float32), ((0, 0), (0, CP - cin)))
        lhs = jnp.concatenate([p1, xq], axis=0)                          # (N*L1+N, CP)
        n_lhs_rows = N * L1 + N

        kernel = functools.partial(
            _customdense_kernel,
            n=N, l1=L1, l2=L2, l3=L3, k2=K2, k3=K3, s2=S2, s3=S3)

        out = pl.pallas_call(
            kernel,
            out_shape=jax.ShapeDtypeStruct((N, CP), jnp.float32),
            grid_spec=pltpu.PrefetchScalarGridSpec(
                num_scalar_prefetch=0,
                grid=(1,),                                   # single step: both
                in_specs=[                                   # samples share MXU rows
                    pl.BlockSpec((n_lhs_rows, CP), lambda i: (0, 0)),
                    pl.BlockSpec((n_w_rows, CP), lambda i: (0, 0)),
                    pl.BlockSpec((3, CP), lambda i: (0, 0)),
                ],
                out_specs=pl.BlockSpec((N, CP), lambda i: (0, 0)),
                scratch_shapes=[
                    pltpu.VMEM((N * L1, CP), jnp.float32),   # conv1 output
                    pltpu.VMEM((N * L2, CP), jnp.float32),   # conv2 output
                ],
            ),
            compiler_params=pltpu.CompilerParams(
                dimension_semantics=("arbitrary",),
                vmem_limit_bytes=32 * 1024 * 1024),
        )(lhs, w_all, b_all)
        return out[:, :dout]                                             # (N, 32)

    def forward(x):
        return _fwd(x, w_all, b_all)

    return forward


if __name__ == "__main__":
    key = jax.random.PRNGKey(0)
    ks = jax.random.split(key, 9)

    # Smallest config consistent with the module: kernels 11/7/5, strides 5/3/2,
    # L=101 -> conv lengths 19 -> 5 -> 1, so 4 + 6*1 = 10 = Linear in-features.
    N, in_ch, L = 2, 4, 101
    features = (8, 8, 6)

    def u(k, shape, fan_in):
        bound = 1.0 / (fan_in ** 0.5)
        return jax.random.uniform(k, shape, jnp.float32, -bound, bound)

    x = jax.random.normal(ks[0], (N, in_ch, L), dtype=jnp.float32)
    w1 = u(ks[1], (features[0], in_ch, 11), in_ch * 11)
    b1 = u(ks[2], (features[0],), in_ch * 11)
    w2 = u(ks[3], (features[1], features[0], 7), features[0] * 7)
    b2 = u(ks[4], (features[1],), features[0] * 7)
    w3 = u(ks[5], (features[2], features[1], 5), features[1] * 5)
    b3 = u(ks[6], (features[2],), features[1] * 5)
    wf = u(ks[7], (32, 10), 10)
    bf = u(ks[8], (32,), 10)
    params = ((w1, b1), (w2, b2), (w3, b3), (wf, bf))

    forward = make_customdense_forward(params, L=L)     # weights packed once here
    out = jax.block_until_ready(forward(x))
    assert out.shape == (N, 32)

    # Pure-JAX reference reproducing the PyTorch forward exactly.
    hp = jax.lax.Precision.HIGHEST

    def conv1d_ref(h, w, b, s):
        y = lax.conv_general_dilated(
            h, w, window_strides=(s,), padding="VALID",
            dimension_numbers=("NCH", "OIH", "NCH"), precision=hp)
        return y + b[None, :, None]

    nq = x[:, :, -1]
    h = conv1d_ref(x, w1, b1, 5)
    h = conv1d_ref(h, w2, b2, 3)
    h = conv1d_ref(h, w3, b3, 2)
    ref = jnp.dot(jnp.concatenate([nq, h.reshape(N, -1)], axis=1), wf.T,
                  precision=hp) + bf

    assert jnp.allclose(out, ref, atol=2e-3, rtol=2e-3), (
        float(jnp.max(jnp.abs(out - ref))))
    print("KERNEL_OK")
</pallas_src>

<mosaic_0001>
module attributes {stable_mosaic.version = 11 : i64} {
  func.func @_customdense_kernel(%arg0: i32, %arg1: memref<40x128xf32, #tpu.memory_space<vmem>>, %arg2: memref<1792x128xf32, #tpu.memory_space<vmem>>, %arg3: memref<3x128xf32, #tpu.memory_space<vmem>>, %arg4: memref<2x128xf32, #tpu.memory_space<vmem>>, %arg5: memref<38x128xf32, #tpu.memory_space<vmem>>, %arg6: memref<10x128xf32, #tpu.memory_space<vmem>>) attributes {dimension_semantics = [#tpu.dimension_semantics<arbitrary>], iteration_bounds = array<i64: 1>, scalar_prefetch = 0 : i64, scratch_operands = 2 : i64, tpu.core_type = #tpu.core_type<tc>, window_params = [{pipeline_mode = #tpu.pipeline_mode<synchronous>, transform_indices = @transform_0, window_bounds = array<i64: 40, 128>}, {pipeline_mode = #tpu.pipeline_mode<synchronous>, transform_indices = @transform_1, window_bounds = array<i64: 1792, 128>}, {pipeline_mode = #tpu.pipeline_mode<synchronous>, transform_indices = @transform_2, window_bounds = array<i64: 3, 128>}, {pipeline_mode = #tpu.pipeline_mode<synchronous>, transform_indices = @transform_3, window_bounds = array<i64: 2, 128>}]} {
    %c0 = arith.constant 0 : index
    %c0_0 = arith.constant 0 : index
    %0 = vector.load %arg1[%c0, %c0_0] : memref<40x128xf32, #tpu.memory_space<vmem>>, vector<38x128xf32>
    %c0_1 = arith.constant 0 : index
    %c0_2 = arith.constant 0 : index
    %1 = vector.load %arg2[%c0_1, %c0_2] : memref<1792x128xf32, #tpu.memory_space<vmem>>, vector<128x128xf32>
    %cst = arith.constant dense<0.000000e+00> : vector<38x128xf32>
    %2 = tpu.matmul %0, %1, %cst {dimension_numbers = #tpu.dot_dimension_numbers<[1], [0], [0], [1], [0, 0, 1, 1], [], []>} : vector<38x128xf32>, vector<128x128xf32>, vector<38x128xf32> -> vector<38x128xf32>
    %c0_3 = arith.constant 0 : index
    %c0_4 = arith.constant 0 : index
    %3 = vector.load %arg3[%c0_3, %c0_4] : memref<3x128xf32, #tpu.memory_space<vmem>>, vector<1x128xf32>
    %4 = vector.broadcast %3 : vector<1x128xf32> to vector<38x128xf32>
    %5 = arith.addf %2, %4 : vector<38x128xf32>
    %c0_5 = arith.constant 0 : index
    %c0_6 = arith.constant 0 : index
    %6 = vector.load %arg5[%c0_5, %c0_6] : memref<38x128xf32, #tpu.memory_space<vmem>>, vector<38x128xf32>
    tpu.vector_store %arg5[%c0_5, %c0_6], %5 {strides = array<i32>} : memref<38x128xf32, #tpu.memory_space<vmem>>, vector<38x128xf32>,
    %c0_7 = arith.constant 0 : index
    %c0_8 = arith.constant 0 : index
    %7 = tpu.strided_load %arg5[%c0_7, %c0_8] {strides = array<i32: 3, 1>} : memref<38x128xf32, #tpu.memory_space<vmem>>, vector<5x128xf32>
    %c1 = arith.constant 1 : index
    %c0_9 = arith.constant 0 : index
    %8 = tpu.strided_load %arg5[%c1, %c0_9] {strides = array<i32: 3, 1>} : memref<38x128xf32, #tpu.memory_space<vmem>>, vector<5x128xf32>
    %c2 = arith.constant 2 : index
    %c0_10 = arith.constant 0 : index
    %9 = tpu.strided_load %arg5[%c2, %c0_10] {strides = array<i32: 3, 1>} : memref<38x128xf32, #tpu.memory_space<vmem>>, vector<5x128xf32>
    %c3 = arith.constant 3 : index
    %c0_11 = arith.constant 0 : index
    %10 = tpu.strided_load %arg5[%c3, %c0_11] {strides = array<i32: 3, 1>} : memref<38x128xf32, #tpu.memory_space<vmem>>, vector<5x128xf32>
    %c4 = arith.constant 4 : index
    %c0_12 = arith.constant 0 : index
    %11 = tpu.strided_load %arg5[%c4, %c0_12] {strides = array<i32: 3, 1>} : memref<38x128xf32, #tpu.memory_space<vmem>>, vector<5x128xf32>
    %c5 = arith.constant 5 : index
    %c0_13 = arith.constant 0 : index
    %12 = tpu.strided_load %arg5[%c5, %c0_13] {strides = array<i32: 3, 1>} : memref<38x128xf32, #tpu.memory_space<vmem>>, vector<5x128xf32>
    %c6 = arith.constant 6 : index
    %c0_14 = arith.constant 0 : index
    %13 = tpu.strided_load %arg5[%c6, %c0_14] {strides = array<i32: 3, 1>} : memref<38x128xf32, #tpu.memory_space<vmem>>, vector<5x128xf32>
    %14 = tpu.concatenate %7, %8, %9, %10, %11, %12, %13 in 1 : vector<5x128xf32>, vector<5x128xf32>, vector<5x128xf32>, vector<5x128xf32>, vector<5x128xf32>, vector<5x128xf32>, vector<5x128xf32> -> vector<5x896xf32>
    %c19 = arith.constant 19 : index
    %c0_15 = arith.constant 0 : index
    %15 = tpu.strided_load %arg5[%c19, %c0_15] {strides = array<i32: 3, 1>} : memref<38x128xf32, #tpu.memory_space<vmem>>, vector<5x128xf32>
    %c20 = arith.constant 20 : index
    %c0_16 = arith.constant 0 : index
    %16 = tpu.strided_load %arg5[%c20, %c0_16] {strides = array<i32: 3, 1>} : memref<38x128xf32, #tpu.memory_space<vmem>>, vector<5x128xf32>
    %c21 = arith.constant 21 : index
    %c0_17 = arith.constant 0 : index
    %17 = tpu.strided_load %arg5[%c21, %c0_17] {strides = array<i32: 3, 1>} : memref<38x128xf32, #tpu.memory_space<vmem>>, vector<5x128xf32>
    %c22 = arith.constant 22 : index
    %c0_18 = arith.constant 0 : index
    %18 = tpu.strided_load %arg5[%c22, %c0_18] {strides = array<i32: 3, 1>} : memref<38x128xf32, #tpu.memory_space<vmem>>, vector<5x128xf32>
    %c23 = arith.constant 23 : index
    %c0_19 = arith.constant 0 : index
    %19 = tpu.strided_load %arg5[%c23, %c0_19] {strides = array<i32: 3, 1>} : memref<38x128xf32, #tpu.memory_space<vmem>>, vector<5x128xf32>
    %c24 = arith.constant 24 : index
    %c0_20 = arith.constant 0 : index
    %20 = tpu.strided_load %arg5[%c24, %c0_20] {strides = array<i32: 3, 1>} : memref<38x128xf32, #tpu.memory_space<vmem>>, vector<5x128xf32>
    %c25 = arith.constant 25 : index
    %c0_21 = arith.constant 0 : index
    %21 = tpu.strided_load %arg5[%c25, %c0_21] {strides = array<i32: 3, 1>} : memref<38x128xf32, #tpu.memory_space<vmem>>, vector<5x128xf32>
    %22 = tpu.concatenate %15, %16, %17, %18, %19, %20, %21 in 1 : vector<5x128xf32>, vector<5x128xf32>, vector<5x128xf32>, vector<5x128xf32>, vector<5x128xf32>, vector<5x128xf32>, vector<5x128xf32> -> vector<5x896xf32>
    %23 = tpu.concatenate %14, %22 in 0 : vector<5x896xf32>, vector<5x896xf32> -> vector<10x896xf32>
    %c256 = arith.constant 256 : index
    %c0_22 = arith.constant 0 : index
    %24 = vector.load %arg2[%c256, %c0_22] : memref<1792x128xf32, #tpu.memory_space<vmem>>, vector<896x128xf32>
    %cst_23 = arith.constant dense<0.000000e+00> : vector<10x128xf32>
    %25 = tpu.matmul %23, %24, %cst_23 {dimension_numbers = #tpu.dot_dimension_numbers<[1], [0], [0], [1], [0, 0, 1, 1], [], []>} : vector<10x896xf32>, vector<896x128xf32>, vector<10x128xf32> -> vector<10x128xf32>
    %c1_24 = arith.constant 1 : index
    %c0_25 = arith.constant 0 : index
    %26 = vector.load %arg3[%c1_24, %c0_25] : memref<3x128xf32, #tpu.memory_space<vmem>>, vector<1x128xf32>
    %27 = vector.broadcast %26 : vector<1x128xf32> to vector<10x128xf32>
    %28 = arith.addf %25, %27 : vector<10x128xf32>
    %c0_26 = arith.constant 0 : index
    %c0_27 = arith.constant 0 : index
    %29 = vector.load %arg6[%c0_26, %c0_27] : memref<10x128xf32, #tpu.memory_space<vmem>>, vector<10x128xf32>
    tpu.vector_store %arg6[%c0_26, %c0_27], %28 {strides = array<i32>} : memref<10x128xf32, #tpu.memory_space<vmem>>, vector<10x128xf32>,
    %c38 = arith.constant 38 : index
    %c0_28 = arith.constant 0 : index
    %30 = vector.load %arg1[%c38, %c0_28] : memref<40x128xf32, #tpu.memory_space<vmem>>, vector<2x128xf32>
    %c128 = arith.constant 128 : index
    %c0_29 = arith.constant 0 : index
    %31 = vector.load %arg2[%c128, %c0_29] : memref<1792x128xf32, #tpu.memory_space<vmem>>, vector<128x128xf32>
    %cst_30 = arith.constant dense<0.000000e+00> : vector<2x128xf32>
    %32 = tpu.matmul %30, %31, %cst_30 {dimension_numbers = #tpu.dot_dimension_numbers<[1], [0], [0], [1], [0, 0, 1, 1], [], []>} : vector<2x128xf32>, vector<128x128xf32>, vector<2x128xf32> -> vector<2x128xf32>
    %c0_31 = arith.constant 0 : index
    %c0_32 = arith.constant 0 : index
    %33 = tpu.strided_load %arg6[%c0_31, %c0_32] {strides = array<i32: 5, 1>} : memref<10x128xf32, #tpu.memory_space<vmem>>, vector<2x128xf32>
    %c1_33 = arith.constant 1 : index
    %c0_34 = arith.constant 0 : index
    %34 = tpu.strided_load %arg6[%c1_33, %c0_34] {strides = array<i32: 5, 1>} : memref<10x128xf32, #tpu.memory_space<vmem>>, vector<2x128xf32>
    %c2_35 = arith.constant 2 : index
    %c0_36 = arith.constant 0 : index
    %35 = tpu.strided_load %arg6[%c2_35, %c0_36] {strides = array<i32: 5, 1>} : memref<10x128xf32, #tpu.memory_space<vmem>>, vector<2x128xf32>
    %c3_37 = arith.constant 3 : index
    %c0_38 = arith.constant 0 : index
    %36 = tpu.strided_load %arg6[%c3_37, %c0_38] {strides = array<i32: 5, 1>} : memref<10x128xf32, #tpu.memory_space<vmem>>, vector<2x128xf32>
    %c4_39 = arith.constant 4 : index
    %c0_40 = arith.constant 0 : index
    %37 = tpu.strided_load %arg6[%c4_39, %c0_40] {strides = array<i32: 5, 1>} : memref<10x128xf32, #tpu.memory_space<vmem>>, vector<2x128xf32>
    %38 = tpu.concatenate %33, %34, %35, %36, %37 in 1 : vector<2x128xf32>, vector<2x128xf32>, vector<2x128xf32>, vector<2x128xf32>, vector<2x128xf32> -> vector<2x640xf32>
    %c1152 = arith.constant 1152 : index
    %c0_41 = arith.constant 0 : index
    %39 = vector.load %arg2[%c1152, %c0_41] : memref<1792x128xf32, #tpu.memory_space<vmem>>, vector<640x128xf32>
    %cst_42 = arith.constant dense<0.000000e+00> : vector<2x128xf32>
    %40 = tpu.matmul %38, %39, %cst_42 {dimension_numbers = #tpu.dot_dimension_numbers<[1], [0], [0], [1], [0, 0, 1, 1], [], []>} : vector<2x640xf32>, vector<640x128xf32>, vector<2x128xf32> -> vector<2x128xf32>
    %41 = arith.addf %32, %40 : vector<2x128xf32>
    %c2_43 = arith.constant 2 : index
    %c0_44 = arith.constant 0 : index
    %42 = vector.load %arg3[%c2_43, %c0_44] : memref<3x128xf32, #tpu.memory_space<vmem>>, vector<1x128xf32>
    %43 = vector.broadcast %42 : vector<1x128xf32> to vector<2x128xf32>
    %44 = arith.addf %41, %43 : vector<2x128xf32>
    %c0_45 = arith.constant 0 : index
    %c0_46 = arith.constant 0 : index
    %45 = vector.load %arg4[%c0_45, %c0_46] : memref<2x128xf32, #tpu.memory_space<vmem>>, vector<2x128xf32>
    tpu.vector_store %arg4[%c0_45, %c0_46], %44 {strides = array<i32>} : memref<2x128xf32, #tpu.memory_space<vmem>>, vector<2x128xf32>,
    return
  }
  func.func @transform_0(%arg0: i32) -> (i32, i32) {
    %c0_i32 = arith.constant 0 : i32
    %c0_i32_0 = arith.constant 0 : i32
    %c0_i32_1 = arith.constant 0 : i32
    return %c0_i32, %c0_i32_0 : i32, i32
  }
  func.func @transform_1(%arg0: i32) -> (i32, i32) {
    %c0_i32 = arith.constant 0 : i32
    %c0_i32_0 = arith.constant 0 : i32
    %c0_i32_1 = arith.constant 0 : i32
    return %c0_i32, %c0_i32_0 : i32, i32
  }
  func.func @transform_2(%arg0: i32) -> (i32, i32) {
    %c0_i32 = arith.constant 0 : i32
    %c0_i32_0 = arith.constant 0 : i32
    %c0_i32_1 = arith.constant 0 : i32
    return %c0_i32, %c0_i32_0 : i32, i32
  }
  func.func @transform_3(%arg0: i32) -> (i32, i32) {
    %c0_i32 = arith.constant 0 : i32
    %c0_i32_0 = arith.constant 0 : i32
    %c0_i32_1 = arith.constant 0 : i32
    return %c0_i32, %c0_i32_0 : i32, i32
  }
}

</mosaic_0001>

<llo_original>
// kernel: _fwd.1
$region0: #{_fwd.1}
  #allocation0 [shape = 'u32[]', space=smem, size = 0x4, offset = 0x4, fixed_abs, tag = 'smem constant byte address 0x4 - core index']
  #allocation1 [shape = 'u32[144,128]{1,0:T(1,128)}', space=vmem, size = 0x12000, scoped, tag = 'internal scratch']
  #allocation2 [shape = 'f32[38,128]{1,0:T(8,128)}', space=vmem, size = 0x5000, scoped, tag = 'scratch operand']
  #allocation3 [shape = 'f32[10,128]{1,0:T(8,128)}', space=vmem, size = 0x2000, scoped, tag = 'scratch operand']
  %s0 = inlined_call_operand.vmem [shape: f32[40,128], index: 0, kind: input, shape index: {}]
  %s1 = inlined_call_operand.hbm [shape: f32[1792,128], index: 1, kind: input, shape index: {}]
  %s2 = inlined_call_operand.vmem [shape: f32[3,128], index: 2, kind: input, shape index: {}]
  %s3 = inlined_call_operand.hbm [shape: f32[2,128], index: 3, kind: output, shape index: {}]
  %s4 = sld [smem:[#allocation0]]
  $region26: #{_fwd.1} parent=0
    _
  %s6 = ssub.s32 1, %s4
  %s7 = scalar_select 0, %s6, %s4
  $region1: #{_fwd.1} parent=0
    #allocation4 [shape = 'u8[917504]{0}', space=vmem, size = 0xe0000, scoped, tag = 'input window, operand 1, single buffered']
    #allocation5 [shape = 's32[1]{0}', space=sflag, size = 0x4, scoped, tag = 'scoped memory for _fwd.1']
    #allocation6 [shape = 's32[1]{0}', space=sflag, size = 0x4, scoped, tag = 'scoped memory for _fwd.1']
    #allocation7 [shape = 'u8[1024]{0}', space=vmem, size = 0x400, scoped, tag = 'output window, operand 0, single buffered']
    %8 = vsyncpa [#allocation5], 0
    %9 = vsyncpa [#allocation6], 0
    // Predicated region
    $region2: #{_fwd.1} parent=1 // pred_check
      _
    $region3: #{_fwd.1} parent=1 // pred_check_branch
      %11 = sbr.rel (0) target = $region5
    $region4: #{_fwd.1} parent=1 // pred_region
      _
    $region5: #{_fwd.1} parent=1 // pred_fallthru
      _
    // Predicated region
    $region6: #{_fwd.1} parent=1 // pred_check
      _
    $region7: #{_fwd.1} parent=1 // pred_check_branch
      %13 = sbr.rel (0) target = $region9
    $region8: #{_fwd.1} parent=1 // pred_region
      %s15 = ssub.s32 28672, 28672
      %16 = vsyncadd [#allocation5], %s15
      %s17 = sshll.u32 [#allocation4], 4
      %s18 = int_to_ptr.vmem [resolvable:$true] %s17
      %23 = dma.hbm_to_vmem [thread:$0]  %s1, 28672, %s18, [#allocation5], 128, 128, 8
    $region9: #{_fwd.1} parent=1 // pred_fallthru
      _
    // Predicated region
    $region10: #{_fwd.1} parent=1 // pred_check
      _
    $region11: #{_fwd.1} parent=1 // pred_check_branch
      %25 = sbr.rel (0) target = $region13
    $region12: #{_fwd.1} parent=1 // pred_region
      _
    $region13: #{_fwd.1} parent=1 // pred_fallthru
      _
    // Predicated region
    $region14: #{_fwd.1} parent=1 // pred_check
      _
    $region15: #{_fwd.1} parent=1 // pred_check_branch
      %27 = sbr.rel (0) target = $region17
    $region16: #{_fwd.1} parent=1 // pred_region
      %28 = dma.done [#allocation5], 28672
    $region17: #{_fwd.1} parent=1 // pred_fallthru
      _
    %v29 = vld [vmem:[%s0] sm:$0xff]
    %v30 = vld [vmem:[%s0 + $0x8] sm:$0xff]
    %v31 = vld [vmem:[%s0 + $0x10] sm:$0xff]
    %v32 = vld [vmem:[%s0 + $0x18] sm:$0xff]
    %v33 = vld [vmem:[%s0 + $0x20] sm:$0x3f]
    %v34 = vld [vmem:[#allocation4] sm:$0xff]
    %v35 = vld [vmem:[#allocation4 + $0x8] sm:$0xff]
    %v36 = vld [vmem:[#allocation4 + $0x10] sm:$0xff]
    %v37 = vld [vmem:[#allocation4 + $0x18] sm:$0xff]
    %v38 = vld [vmem:[#allocation4 + $0x20] sm:$0xff]
    %v39 = vld [vmem:[#allocation4 + $0x28] sm:$0xff]
    %v40 = vld [vmem:[#allocation4 + $0x30] sm:$0xff]
    %v41 = vld [vmem:[#allocation4 + $0x38] sm:$0xff]
    %v42 = vld [vmem:[#allocation4 + $0x40] sm:$0xff]
    %v43 = vld [vmem:[#allocation4 + $0x48] sm:$0xff]
    %v44 = vld [vmem:[#allocation4 + $0x50] sm:$0xff]
    %v45 = vld [vmem:[#allocation4 + $0x58] sm:$0xff]
    %v46 = vld [vmem:[#allocation4 + $0x60] sm:$0xff]
    %v47 = vld [vmem:[#allocation4 + $0x68] sm:$0xff]
    %v48 = vld [vmem:[#allocation4 + $0x70] sm:$0xff]
    %v49 = vld [vmem:[#allocation4 + $0x78] sm:$0xff]
    %v50 = vld [vmem:[%s2] sm:$0x1]
    %v51 = vlaneseq
    %v52 = vshrl.u32 %v51, 7
    %v53 = vsub.s32 0, %v52
    %v54 = vrot.slane %v50, %v53
    %55 = vmatprep.subr.mxu0 0.0
    %56 = vmatpush1.msra.mxu0 %v34
    %57 = vmatprep.subr.mxu0 0.0
    %58 = vmatpush1.msra.mxu0 %v35
    %59 = vmatprep.subr.mxu0 0.0
    %60 = vmatpush1.msra.mxu0 %v36
    %61 = vmatprep.subr.mxu0 0.0
    %62 = vmatpush1.msra.mxu0 %v37
    %63 = vmatprep.subr.mxu0 0.0
    %64 = vmatpush1.msra.mxu0 %v38
    %65 = vmatprep.subr.mxu0 0.0
    %66 = vmatpush1.msra.mxu0 %v39
    %67 = vmatprep.subr.mxu0 0.0
    %68 = vmatpush1.msra.mxu0 %v40
    %69 = vmatprep.subr.mxu0 0.0
    %70 = vmatpush1.msra.mxu0 %v41
    %71 = vmatprep.subr.mxu0 0.0
    %72 = vmatpush1.msra.mxu0 %v42
    %73 = vmatprep.subr.mxu0 0.0
    %74 = vmatpush1.msra.mxu0 %v43
    %75 = vmatprep.subr.mxu0 0.0
    %76 = vmatpush1.msra.mxu0 %v44
    %77 = vmatprep.subr.mxu0 0.0
    %78 = vmatpush1.msra.mxu0 %v45
    %79 = vmatprep.subr.mxu0 0.0
    %80 = vmatpush1.msra.mxu0 %v46
    %81 = vmatprep.subr.mxu0 0.0
    %82 = vmatpush1.msra.mxu0 %v47
    %83 = vmatprep.subr.mxu0 0.0
    %84 = vmatpush1.msra.mxu0 %v48
    %85 = vmatprep.subr.mxu0 0.0
    %86 = vmatpush1.msra.mxu0 %v49
    %87 = vmatprep.subr.mxu0 0.0
    %88 = vmatpush1.msra.mxu0 0.0
    %89 = vmatprep.subr.mxu0 0.0
    %90 = vmatpush1.msra.mxu0 0.0
    %91 = vmatprep.subr.mxu0 0.0
    %92 = vmatpush1.msra.mxu0 0.0
    %93 = vmatprep.subr.mxu0 0.0
    %94 = vmatpush1.msra.mxu0 0.0
    %95 = vmatprep.subr.mxu0 0.0
    %96 = vmatpush1.msra.mxu0 0.0
    %97 = vmatprep.subr.mxu0 0.0
    %98 = vmatpush1.msra.mxu0 0.0
    %99 = vmatprep.subr.mxu0 0.0
    %100 = vmatpush1.msra.mxu0 0.0
    %101 = vmatprep.subr.mxu0 0.0
    %102 = vmatpush1.msra.mxu0 0.0
    %103 = vmatprep.subr.mxu0 0.0
    %104 = vmatpush1.msra.mxu0 0.0
    %105 = vmatprep.subr.mxu0 0.0
    %106 = vmatpush1.msra.mxu0 0.0
    %107 = vmatprep.subr.mxu0 0.0
    %108 = vmatpush1.msra.mxu0 0.0
    %109 = vmatprep.subr.mxu0 0.0
    %110 = vmatpush1.msra.mxu0 0.0
    %111 = vmatprep.subr.mxu0 0.0
    %112 = vmatpush1.msra.mxu0 0.0
    %113 = vmatprep.subr.mxu0 0.0
    %114 = vmatpush1.msra.mxu0 0.0
    %115 = vmatprep.subr.mxu0 0.0
    %116 = vmatpush1.msra.mxu0 0.0
    %117 = vmatprep.subr.mxu0 0.0
    %118 = vmatpush1.msra.mxu0 0.0
    %119 = vmatprep.mubr.f32.mxu0 0.0
    %120 = vmatmul.mubr.f32.gmra.mrb[0].mxu0 %v29
    %v121 = vpop.f32.mrb[0].mxu0
    %v122 = vadd.f32 %v54, %v121
    %v123 = vpop.f32.mrb[0].mxu0
    %124 = vmatprep.mubr.f32.mxu0 0.0
    %125 = vmatmul.mubr.f32.gmra.mrb[0].mxu0 %v30
    %v126 = vpop.f32.mrb[0].mxu0
    %v127 = vadd.f32 %v54, %v126
    %v128 = vpop.f32.mrb[0].mxu0
    %129 = vmatprep.mubr.f32.mxu0 0.0
    %130 = vmatmul.mubr.f32.gmra.mrb[0].mxu0 %v31
    %v131 = vpop.f32.mrb[0].mxu0
    %v132 = vadd.f32 %v54, %v131
    %v133 = vpop.f32.mrb[0].mxu0
    %134 = vmatprep.mubr.f32.mxu0 0.0
    %135 = vmatmul.mubr.f32.gmra.mrb[0].mxu0 %v32
    %v136 = vpop.f32.mrb[0].mxu0
    %v137 = vadd.f32 %v54, %v136
    %v138 = vpop.f32.mrb[0].mxu0
    %139 = vmatprep.mubr.f32.mxu0 0.0
    %140 = vmatmul.mubr.f32.gmra.mrb[0].mxu0 %v33
    %v141 = vpop.f32.mrb[0].mxu0
    %v142 = vadd.f32 %v54, %v141
    %v143 = vpop.f32.mrb[0].mxu0
    %144 = vdwg.mxu0
    %145 = vst [vmem:[#allocation2] sm:$0xff] %v122
    %146 = vst [vmem:[#allocation2 + $0x8] sm:$0xff] %v127
    %147 = vst [vmem:[#allocation2 + $0x10] sm:$0xff] %v132
    %148 = vst [vmem:[#allocation2 + $0x18] sm:$0xff] %v137
    %149 = vst [vmem:[#allocation2 + $0x20] sm:$0x3f] %v142
    %v150 = vld [vmem:[#allocation2] ss:$3 sm:$0x1f]
    %s151 = scalar_lea.vmem [#allocation2], 1
    %v152 = vld [vmem:[%s151] ss:$3 sm:$0x1f]
    %s153 = scalar_lea.vmem [#allocation2], 2
    %v154 = vld [vmem:[%s153] ss:$3 sm:$0x1f]
    %s155 = scalar_lea.vmem [#allocation2], 3
    %v156 = vld [vmem:[%s155] ss:$3 sm:$0x1f]
    %s157 = scalar_lea.vmem [#allocation2], 4
    %v158 = vld [vmem:[%s157] ss:$3 sm:$0x1f]
    %s159 = scalar_lea.vmem [#allocation2], 5
    %v160 = vld [vmem:[%s159] ss:$3 sm:$0x1f]
    %s161 = scalar_lea.vmem [#allocation2], 6
    %v162 = vld [vmem:[%s161] ss:$3 sm:$0x1f]
    %s163 = scalar_lea.vmem [#allocation2], 19
    %v164 = vld [vmem:[%s163] ss:$3 sm:$0x1f]
    %s165 = scalar_lea.vmem [#allocation2], 20
    %v166 = vld [vmem:[%s165] ss:$3 sm:$0x1f]
    %s167 = scalar_lea.vmem [#allocation2], 21
    %v168 = vld [vmem:[%s167] ss:$3 sm:$0x1f]
    %s169 = scalar_lea.vmem [#allocation2], 22
    %v170 = vld [vmem:[%s169] ss:$3 sm:$0x1f]
    %s171 = scalar_lea.vmem [#allocation2], 23
    %v172 = vld [vmem:[%s171] ss:$3 sm:$0x1f]
    %s173 = scalar_lea.vmem [#allocation2], 24
    %v174 = vld [vmem:[%s173] ss:$3 sm:$0x1f]
    %s175 = scalar_lea.vmem [#allocation2], 25
    %v176 = vld [vmem:[%s175] ss:$3 sm:$0x1f]
    %v184 = vrot.slane %v164, 3
    %v185 = vrot.slane %v166, 3
    %v186 = vrot.slane %v168, 3
    %v187 = vrot.slane %v170, 3
    %v188 = vrot.slane %v172, 3
    %v189 = vrot.slane %v174, 3
    %v190 = vrot.slane %v176, 3
    %vm198 = vcmask 1044480
    %v199 = vsel %vm198, %v150, %v184
    %v200 = vsel %vm198, %v152, %v185
    %v201 = vsel %vm198, %v154, %v186
    %v202 = vsel %vm198, %v156, %v187
    %v203 = vsel %vm198, %v158, %v188
    %v204 = vsel %vm198, %v160, %v189
    %v205 = vsel %vm198, %v162, %v190
    %v206 = vld [vmem:[#allocation4 + $0x100] sm:$0xff]
    %v207 = vld [vmem:[#allocation4 + $0x108] sm:$0xff]
    %v208 = vld [vmem:[#allocation4 + $0x110] sm:$0xff]
    %v209 = vld [vmem:[#allocation4 + $0x118] sm:$0xff]
    %v210 = vld [vmem:[#allocation4 + $0x120] sm:$0xff]
    %v211 = vld [vmem:[#allocation4 + $0x128] sm:$0xff]
    %v212 = vld [vmem:[#allocation4 + $0x130] sm:$0xff]
    %v213 = vld [vmem:[#allocation4 + $0x138] sm:$0xff]
    %v214 = vld [vmem:[#allocation4 + $0x140] sm:$0xff]
    %v215 = vld [vmem:[#allocation4 + $0x148] sm:$0xff]
    %v216 = vld [vmem:[#allocation4 + $0x150] sm:$0xff]
    %v217 = vld [vmem:[#allocation4 + $0x158] sm:$0xff]
    %v218 = vld [vmem:[#allocation4 + $0x160] sm:$0xff]
    %v219 = vld [vmem:[#allocation4 + $0x168] sm:$0xff]
    %v220 = vld [vmem:[#allocation4 + $0x170] sm:$0xff]
    %v221 = vld [vmem:[#allocation4 + $0x178] sm:$0xff]
    %v222 = vld [vmem:[#allocation4 + $0x180] sm:$0xff]
    %v223 = vld [vmem:[#allocation4 + $0x188] sm:$0xff]
    %v224 = vld [vmem:[#allocation4 + $0x190] sm:$0xff]
    %v225 = vld [vmem:[#allocation4 + $0x198] sm:$0xff]
    %v226 = vld [vmem:[#allocation4 + $0x1a0] sm:$0xff]
    %v227 = vld [vmem:[#allocation4 + $0x1a8] sm:$0xff]
    %v228 = vld [vmem:[#allocation4 + $0x1b0] sm:$0xff]
    %v229 = vld [vmem:[#allocation4 + $0x1b8] sm:$0xff]
    %v230 = vld [vmem:[#allocation4 + $0x1c0] sm:$0xff]
    %v231 = vld [vmem:[#allocation4 + $0x1c8] sm:$0xff]
    %v232 = vld [vmem:[#allocation4 + $0x1d0] sm:$0xff]
    %v233 = vld [vmem:[#allocation4 + $0x1d8] sm:$0xff]
    %v234 = vld [vmem:[#allocation4 + $0x1e0] sm:$0xff]
    %v235 = vld [vmem:[#allocation4 + $0x1e8] sm:$0xff]
    %v236 = vld [vmem:[#allocation4 + $0x1f0] sm:$0xff]
    %v237 = vld [vmem:[#allocation4 + $0x1f8] sm:$0xff]
    %v238 = vld [vmem:[#allocation4 + $0x200] sm:$0xff]
    %v239 = vld [vmem:[#allocation4 + $0x208] sm:$0xff]
    %v240 = vld [vmem:[#allocation4 + $0x210] sm:$0xff]
    %v241 = vld [vmem:[#allocation4 + $0x218] sm:$0xff]
    %v242 = vld [vmem:[#allocation4 + $0x220] sm:$0xff]
    %v243 = vld [vmem:[#allocation4 + $0x228] sm:$0xff]
    %v244 = vld [vmem:[#allocation4 + $0x230] sm:$0xff]
    %v245 = vld [vmem:[#allocation4 + $0x238] sm:$0xff]
    %v246 = vld [vmem:[#allocation4 + $0x240] sm:$0xff]
    %v247 = vld [vmem:[#allocation4 + $0x248] sm:$0xff]
    %v248 = vld [vmem:[#allocation4 + $0x250] sm:$0xff]
    %v249 = vld [vmem:[#allocation4 + $0x258] sm:$0xff]
    %v250 = vld [vmem:[#allocation4 + $0x260] sm:$0xff]
    %v251 = vld [vmem:[#allocation4 + $0x268] sm:$0xff]
    %v252 = vld [vmem:[#allocation4 + $0x270] sm:$0xff]
    %v253 = vld [vmem:[#allocation4 + $0x278] sm:$0xff]
    %v254 = vld [vmem:[#allocation4 + $0x280] sm:$0xff]
    %v255 = vld [vmem:[#allocation4 + $0x288] sm:$0xff]
    %v256 = vld [vmem:[#allocation4 + $0x290] sm:$0xff]
    %v257 = vld [vmem:[#allocation4 + $0x298] sm:$0xff]
    %v258 = vld [vmem:[#allocation4 + $0x2a0] sm:$0xff]
    %v259 = vld [vmem:[#allocation4 + $0x2a8] sm:$0xff]
    %v260 = vld [vmem:[#allocation4 + $0x2b0] sm:$0xff]
    %v261 = vld [vmem:[#allocation4 + $0x2b8] sm:$0xff]
    %v262 = vld [vmem:[#allocation4 + $0x2c0] sm:$0xff]
    %v263 = vld [vmem:[#allocation4 + $0x2c8] sm:$0xff]
    %v264 = vld [vmem:[#allocation4 + $0x2d0] sm:$0xff]
    %v265 = vld [vmem:[#allocation4 + $0x2d8] sm:$0xff]
    %v266 = vld [vmem:[#allocation4 + $0x2e0] sm:$0xff]
    %v267 = vld [vmem:[#allocation4 + $0x2e8] sm:$0xff]
    %v268 = vld [vmem:[#allocation4 + $0x2f0] sm:$0xff]
    %v269 = vld [vmem:[#allocation4 + $0x2f8] sm:$0xff]
    %v270 = vld [vmem:[#allocation4 + $0x300] sm:$0xff]
    %v271 = vld [vmem:[#allocation4 + $0x308] sm:$0xff]
    %v272 = vld [vmem:[#allocation4 + $0x310] sm:$0xff]
    %v273 = vld [vmem:[#allocation4 + $0x318] sm:$0xff]
    %v274 = vld [vmem:[#allocation4 + $0x320] sm:$0xff]
    %v275 = vld [vmem:[#allocation4 + $0x328] sm:$0xff]
    %v276 = vld [vmem:[#allocation4 + $0x330] sm:$0xff]
    %v277 = vld [vmem:[#allocation4 + $0x338] sm:$0xff]
    %v278 = vld [vmem:[#allocation4 + $0x340] sm:$0xff]
    %v279 = vld [vmem:[#allocation4 + $0x348] sm:$0xff]
    %v280 = vld [vmem:[#allocation4 + $0x350] sm:$0xff]
    %v281 = vld [vmem:[#allocation4 + $0x358] sm:$0xff]
    %v282 = vld [vmem:[#allocation4 + $0x360] sm:$0xff]
    %v283 = vld [vmem:[#allocation4 + $0x368] sm:$0xff]
    %v284 = vld [vmem:[#allocation4 + $0x370] sm:$0xff]
    %v285 = vld [vmem:[#allocation4 + $0x378] sm:$0xff]
    %v286 = vld [vmem:[#allocation4 + $0x380] sm:$0xff]
    %v287 = vld [vmem:[#allocation4 + $0x388] sm:$0xff]
    %v288 = vld [vmem:[#allocation4 + $0x390] sm:$0xff]
    %v289 = vld [vmem:[#allocation4 + $0x398] sm:$0xff]
    %v290 = vld [vmem:[#allocation4 + $0x3a0] sm:$0xff]
    %v291 = vld [vmem:[#allocation4 + $0x3a8] sm:$0xff]
    %v292 = vld [vmem:[#allocation4 + $0x3b0] sm:$0xff]
    %v293 = vld [vmem:[#allocation4 + $0x3b8] sm:$0xff]
    %v294 = vld [vmem:[#allocation4 + $0x3c0] sm:$0xff]
    %v295 = vld [vmem:[#allocation4 + $0x3c8] sm:$0xff]
    %v296 = vld [vmem:[#allocation4 + $0x3d0] sm:$0xff]
    %v297 = vld [vmem:[#allocation4 + $0x3d8] sm:$0xff]
    %v298 = vld [vmem:[#allocation4 + $0x3e0] sm:$0xff]
    %v299 = vld [vmem:[#allocation4 + $0x3e8] sm:$0xff]
    %v300 = vld [vmem:[#allocation4 + $0x3f0] sm:$0xff]
    %v301 = vld [vmem:[#allocation4 + $0x3f8] sm:$0xff]
    %v302 = vld [vmem:[#allocation4 + $0x400] sm:$0xff]
    %v303 = vld [vmem:[#allocation4 + $0x408] sm:$0xff]
    %v304 = vld [vmem:[#allocation4 + $0x410] sm:$0xff]
    %v305 = vld [vmem:[#allocation4 + $0x418] sm:$0xff]
    %v306 = vld [vmem:[#allocation4 + $0x420] sm:$0xff]
    %v307 = vld [vmem:[#allocation4 + $0x428] sm:$0xff]
    %v308 = vld [vmem:[#allocation4 + $0x430] sm:$0xff]
    %v309 = vld [vmem:[#allocation4 + $0x438] sm:$0xff]
    %v310 = vld [vmem:[#allocation4 + $0x440] sm:$0xff]
    %v311 = vld [vmem:[#allocation4 + $0x448] sm:$0xff]
    %v312 = vld [vmem:[#allocation4 + $0x450] sm:$0xff]
    %v313 = vld [vmem:[#allocation4 + $0x458] sm:$0xff]
    %v314 = vld [vmem:[#allocation4 + $0x460] sm:$0xff]
    %v315 = vld [vmem:[#allocation4 + $0x468] sm:$0xff]
    %v316 = vld [vmem:[#allocation4 + $0x470] sm:$0xff]
    %v317 = vld [vmem:[#allocation4 + $0x478] sm:$0xff]
    %v318 = vld [vmem:[%s2 + $0x1] sm:$0x1]
    %v319 = vlaneseq
    %v320 = vshrl.u32 %v319, 7
    %v321 = vsub.s32 0, %v320
    %v322 = vrot.slane %v318, %v321
    %323 = vmatprep.subr.mxu0 0.0
    %324 = vmatpush1.msra.mxu0 %v206
    %325 = vmatprep.subr.mxu0 0.0
    %326 = vmatpush1.msra.mxu0 %v207
    %327 = vmatprep.subr.mxu0 0.0
    %328 = vmatpush1.msra.mxu0 %v208
    %329 = vmatprep.subr.mxu0 0.0
    %330 = vmatpush1.msra.mxu0 %v209
    %331 = vmatprep.subr.mxu0 0.0
    %332 = vmatpush1.msra.mxu0 %v210
    %333 = vmatprep.subr.mxu0 0.0
    %334 = vmatpush1.msra.mxu0 %v211
    %335 = vmatprep.subr.mxu0 0.0
    %336 = vmatpush1.msra.mxu0 %v212
    %337 = vmatprep.subr.mxu0 0.0
    %338 = vmatpush1.msra.mxu0 %v213
    %339 = vmatprep.subr.mxu0 0.0
    %340 = vmatpush1.msra.mxu0 %v214
    %341 = vmatprep.subr.mxu0 0.0
    %342 = vmatpush1.msra.mxu0 %v215
    %343 = vmatprep.subr.mxu0 0.0
    %344 = vmatpush1.msra.mxu0 %v216
    %345 = vmatprep.subr.mxu0 0.0
    %346 = vmatpush1.msra.mxu0 %v217
    %347 = vmatprep.subr.mxu0 0.0
    %348 = vmatpush1.msra.mxu0 %v218
    %349 = vmatprep.subr.mxu0 0.0
    %350 = vmatpush1.msra.mxu0 %v219
    %351 = vmatprep.subr.mxu0 0.0
    %352 = vmatpush1.msra.mxu0 %v220
    %353 = vmatprep.subr.mxu0 0.0
    %354 = vmatpush1.msra.mxu0 %v221
    %355 = vmatprep.subr.mxu0 0.0
    %356 = vmatpush1.msra.mxu0 %v222
    %357 = vmatprep.subr.mxu0 0.0
    %358 = vmatpush1.msra.mxu0 %v223
    %359 = vmatprep.subr.mxu0 0.0
    %360 = vmatpush1.msra.mxu0 %v224
    %361 = vmatprep.subr.mxu0 0.0
    %362 = vmatpush1.msra.mxu0 %v225
    %363 = vmatprep.subr.mxu0 0.0
    %364 = vmatpush1.msra.mxu0 %v226
    %365 = vmatprep.subr.mxu0 0.0
    %366 = vmatpush1.msra.mxu0 %v227
    %367 = vmatprep.subr.mxu0 0.0
    %368 = vmatpush1.msra.mxu0 %v228
    %369 = vmatprep.subr.mxu0 0.0
    %370 = vmatpush1.msra.mxu0 %v229
    %371 = vmatprep.subr.mxu0 0.0
    %372 = vmatpush1.msra.mxu0 %v230
    %373 = vmatprep.subr.mxu0 0.0
    %374 = vmatpush1.msra.mxu0 %v231
    %375 = vmatprep.subr.mxu0 0.0
    %376 = vmatpush1.msra.mxu0 %v232
    %377 = vmatprep.subr.mxu0 0.0
    %378 = vmatpush1.msra.mxu0 %v233
    %379 = vmatprep.subr.mxu0 0.0
    %380 = vmatpush1.msra.mxu0 %v234
    %381 = vmatprep.subr.mxu0 0.0
    %382 = vmatpush1.msra.mxu0 %v235
    %383 = vmatprep.subr.mxu0 0.0
    %384 = vmatpush1.msra.mxu0 %v236
    %385 = vmatprep.subr.mxu0 0.0
    %386 = vmatpush1.msra.mxu0 %v237
    %387 = vmatprep.mubr.f32.mxu0 %v200
    %388 = vmatmul.mubr.f32.gmra.mrb[0].mxu0 %v199
    %v389 = vpop.f32.mrb[0].mxu0
    %v390 = vadd.f32 %v322, %v389
    %v391 = vpop.f32.mrb[0].mxu0
    %392 = vmatprep.mubr.f32.mxu0 %v185
    %393 = vmatmul.mubr.f32.gmra.mrb[0].mxu0 %v184
    %v394 = vpop.f32.mrb[0].mxu0
    %v395 = vadd.f32 %v322, %v394
    %v396 = vpop.f32.mrb[0].mxu0
    %397 = vdwg.mxu0
    %398 = vmatprep.subr.mxu0 0.0
    %399 = vmatpush1.msra.mxu0 %v238
    %400 = vmatprep.subr.mxu0 0.0
    %401 = vmatpush1.msra.mxu0 %v239
    %402 = vmatprep.subr.mxu0 0.0
    %403 = vmatpush1.msra.mxu0 %v240
    %404 = vmatprep.subr.mxu0 0.0
    %405 = vmatpush1.msra.mxu0 %v241
    %406 = vmatprep.subr.mxu0 0.0
    %407 = vmatpush1.msra.mxu0 %v242
    %408 = vmatprep.subr.mxu0 0.0
    %409 = vmatpush1.msra.mxu0 %v243
    %410 = vmatprep.subr.mxu0 0.0
    %411 = vmatpush1.msra.mxu0 %v244
    %412 = vmatprep.subr.mxu0 0.0
    %413 = vmatpush1.msra.mxu0 %v245
    %414 = vmatprep.subr.mxu0 0.0
    %415 = vmatpush1.msra.mxu0 %v246
    %416 = vmatprep.subr.mxu0 0.0
    %417 = vmatpush1.msra.mxu0 %v247
    %418 = vmatprep.subr.mxu0 0.0
    %419 = vmatpush1.msra.mxu0 %v248
    %420 = vmatprep.subr.mxu0 0.0
    %421 = vmatpush1.msra.mxu0 %v249
    %422 = vmatprep.subr.mxu0 0.0
    %423 = vmatpush1.msra.mxu0 %v250
    %424 = vmatprep.subr.mxu0 0.0
    %425 = vmatpush1.msra.mxu0 %v251
    %426 = vmatprep.subr.mxu0 0.0
    %427 = vmatpush1.msra.mxu0 %v252
    %428 = vmatprep.subr.mxu0 0.0
    %429 = vmatpush1.msra.mxu0 %v253
    %430 = vmatprep.subr.mxu0 0.0
    %431 = vmatpush1.msra.mxu0 %v254
    %432 = vmatprep.subr.mxu0 0.0
    %433 = vmatpush1.msra.mxu0 %v255
    %434 = vmatprep.subr.mxu0 0.0
    %435 = vmatpush1.msra.mxu0 %v256
    %436 = vmatprep.subr.mxu0 0.0
    %437 = vmatpush1.msra.mxu0 %v257
    %438 = vmatprep.subr.mxu0 0.0
    %439 = vmatpush1.msra.mxu0 %v258
    %440 = vmatprep.subr.mxu0 0.0
    %441 = vmatpush1.msra.mxu0 %v259
    %442 = vmatprep.subr.mxu0 0.0
    %443 = vmatpush1.msra.mxu0 %v260
    %444 = vmatprep.subr.mxu0 0.0
    %445 = vmatpush1.msra.mxu0 %v261
    %446 = vmatprep.subr.mxu0 0.0
    %447 = vmatpush1.msra.mxu0 %v262
    %448 = vmatprep.subr.mxu0 0.0
    %449 = vmatpush1.msra.mxu0 %v263
    %450 = vmatprep.subr.mxu0 0.0
    %451 = vmatpush1.msra.mxu0 %v264
    %452 = vmatprep.subr.mxu0 0.0
    %453 = vmatpush1.msra.mxu0 %v265
    %454 = vmatprep.subr.mxu0 0.0
    %455 = vmatpush1.msra.mxu0 %v266
    %456 = vmatprep.subr.mxu0 0.0
    %457 = vmatpush1.msra.mxu0 %v267
    %458 = vmatprep.subr.mxu0 0.0
    %459 = vmatpush1.msra.mxu0 %v268
    %460 = vmatprep.subr.mxu0 0.0
    %461 = vmatpush1.msra.mxu0 %v269
    %462 = vmatprep.mubr.f32.mxu0 %v202
    %463 = vmatmul.mubr.f32.gmra.mrb[0].mxu0 %v201
    %v464 = vpop.f32.mrb[0].mxu0
    %v465 = vadd.f32 %v390, %v464
    %v466 = vpop.f32.mrb[0].mxu0
    %467 = vmatprep.mubr.f32.mxu0 %v187
    %468 = vmatmul.mubr.f32.gmra.mrb[0].mxu0 %v186
    %v469 = vpop.f32.mrb[0].mxu0
    %v470 = vadd.f32 %v395, %v469
    %v471 = vpop.f32.mrb[0].mxu0
    %472 = vdwg.mxu0
    %473 = vmatprep.subr.mxu0 0.0
    %474 = vmatpush1.msra.mxu0 %v270
    %475 = vmatprep.subr.mxu0 0.0
    %476 = vmatpush1.msra.mxu0 %v271
    %477 = vmatprep.subr.mxu0 0.0
    %478 = vmatpush1.msra.mxu0 %v272
    %479 = vmatprep.subr.mxu0 0.0
    %480 = vmatpush1.msra.mxu0 %v273
    %481 = vmatprep.subr.mxu0 0.0
    %482 = vmatpush1.msra.mxu0 %v274
    %483 = vmatprep.subr.mxu0 0.0
    %484 = vmatpush1.msra.mxu0 %v275
    %485 = vmatprep.subr.mxu0 0.0
    %486 = vmatpush1.msra.mxu0 %v276
    %487 = vmatprep.subr.mxu0 0.0
    %488 = vmatpush1.msra.mxu0 %v277
    %489 = vmatprep.subr.mxu0 0.0
    %490 = vmatpush1.msra.mxu0 %v278
    %491 = vmatprep.subr.mxu0 0.0
    %492 = vmatpush1.msra.mxu0 %v279
    %493 = vmatprep.subr.mxu0 0.0
    %494 = vmatpush1.msra.mxu0 %v280
    %495 = vmatprep.subr.mxu0 0.0
    %496 = vmatpush1.msra.mxu0 %v281
    %497 = vmatprep.subr.mxu0 0.0
    %498 = vmatpush1.msra.mxu0 %v282
    %499 = vmatprep.subr.mxu0 0.0
    %500 = vmatpush1.msra.mxu0 %v283
    %501 = vmatprep.subr.mxu0 0.0
    %502 = vmatpush1.msra.mxu0 %v284
    %503 = vmatprep.subr.mxu0 0.0
    %504 = vmatpush1.msra.mxu0 %v285
    %505 = vmatprep.subr.mxu0 0.0
    %506 = vmatpush1.msra.mxu0 %v286
    %507 = vmatprep.subr.mxu0 0.0
    %508 = vmatpush1.msra.mxu0 %v287
    %509 = vmatprep.subr.mxu0 0.0
    %510 = vmatpush1.msra.mxu0 %v288
    %511 = vmatprep.subr.mxu0 0.0
    %512 = vmatpush1.msra.mxu0 %v289
    %513 = vmatprep.subr.mxu0 0.0
    %514 = vmatpush1.msra.mxu0 %v290
    %515 = vmatprep.subr.mxu0 0.0
    %516 = vmatpush1.msra.mxu0 %v291
    %517 = vmatprep.subr.mxu0 0.0
    %518 = vmatpush1.msra.mxu0 %v292
    %519 = vmatprep.subr.mxu0 0.0
    %520 = vmatpush1.msra.mxu0 %v293
    %521 = vmatprep.subr.mxu0 0.0
    %522 = vmatpush1.msra.mxu0 %v294
    %523 = vmatprep.subr.mxu0 0.0
    %524 = vmatpush1.msra.mxu0 %v295
    %525 = vmatprep.subr.mxu0 0.0
    %526 = vmatpush1.msra.mxu0 %v296
    %527 = vmatprep.subr.mxu0 0.0
    %528 = vmatpush1.msra.mxu0 %v297
    %529 = vmatprep.subr.mxu0 0.0
    %530 = vmatpush1.msra.mxu0 %v298
    %531 = vmatprep.subr.mxu0 0.0
    %532 = vmatpush1.msra.mxu0 %v299
    %533 = vmatprep.subr.mxu0 0.0
    %534 = vmatpush1.msra.mxu0 %v300
    %535 = vmatprep.subr.mxu0 0.0
    %536 = vmatpush1.msra.mxu0 %v301
    %537 = vmatprep.mubr.f32.mxu0 %v204
    %538 = vmatmul.mubr.f32.gmra.mrb[0].mxu0 %v203
    %v539 = vpop.f32.mrb[0].mxu0
    %v540 = vadd.f32 %v465, %v539
    %v541 = vpop.f32.mrb[0].mxu0
    %542 = vmatprep.mubr.f32.mxu0 %v189
    %543 = vmatmul.mubr.f32.gmra.mrb[0].mxu0 %v188
    %v544 = vpop.f32.mrb[0].mxu0
    %v545 = vadd.f32 %v470, %v544
    %v546 = vpop.f32.mrb[0].mxu0
    %547 = vdwg.mxu0
    %548 = vmatprep.subr.mxu0 0.0
    %549 = vmatpush1.msra.mxu0 %v302
    %550 = vmatprep.subr.mxu0 0.0
    %551 = vmatpush1.msra.mxu0 %v303
    %552 = vmatprep.subr.mxu0 0.0
    %553 = vmatpush1.msra.mxu0 %v304
    %554 = vmatprep.subr.mxu0 0.0
    %555 = vmatpush1.msra.mxu0 %v305
    %556 = vmatprep.subr.mxu0 0.0
    %557 = vmatpush1.msra.mxu0 %v306
    %558 = vmatprep.subr.mxu0 0.0
    %559 = vmatpush1.msra.mxu0 %v307
    %560 = vmatprep.subr.mxu0 0.0
    %561 = vmatpush1.msra.mxu0 %v308
    %562 = vmatprep.subr.mxu0 0.0
    %563 = vmatpush1.msra.mxu0 %v309
    %564 = vmatprep.subr.mxu0 0.0
    %565 = vmatpush1.msra.mxu0 %v310
    %566 = vmatprep.subr.mxu0 0.0
    %567 = vmatpush1.msra.mxu0 %v311
    %568 = vmatprep.subr.mxu0 0.0
    %569 = vmatpush1.msra.mxu0 %v312
    %570 = vmatprep.subr.mxu0 0.0
    %571 = vmatpush1.msra.mxu0 %v313
    %572 = vmatprep.subr.mxu0 0.0
    %573 = vmatpush1.msra.mxu0 %v314
    %574 = vmatprep.subr.mxu0 0.0
    %575 = vmatpush1.msra.mxu0 %v315
    %576 = vmatprep.subr.mxu0 0.0
    %577 = vmatpush1.msra.mxu0 %v316
    %578 = vmatprep.subr.mxu0 0.0
    %579 = vmatpush1.msra.mxu0 %v317
    %580 = vmatprep.subr.mxu0 0.0
    %581 = vmatpush1.msra.mxu0 0.0
    %582 = vmatprep.subr.mxu0 0.0
    %583 = vmatpush1.msra.mxu0 0.0
    %584 = vmatprep.subr.mxu0 0.0
    %585 = vmatpush1.msra.mxu0 0.0
    %586 = vmatprep.subr.mxu0 0.0
    %587 = vmatpush1.msra.mxu0 0.0
    %588 = vmatprep.subr.mxu0 0.0
    %589 = vmatpush1.msra.mxu0 0.0
    %590 = vmatprep.subr.mxu0 0.0
    %591 = vmatpush1.msra.mxu0 0.0
    %592 = vmatprep.subr.mxu0 0.0
    %593 = vmatpush1.msra.mxu0 0.0
    %594 = vmatprep.subr.mxu0 0.0
    %595 = vmatpush1.msra.mxu0 0.0
    %596 = vmatprep.subr.mxu0 0.0
    %597 = vmatpush1.msra.mxu0 0.0
    %598 = vmatprep.subr.mxu0 0.0
    %599 = vmatpush1.msra.mxu0 0.0
    %600 = vmatprep.subr.mxu0 0.0
    %601 = vmatpush1.msra.mxu0 0.0
    %602 = vmatprep.subr.mxu0 0.0
    %603 = vmatpush1.msra.mxu0 0.0
    %604 = vmatprep.subr.mxu0 0.0
    %605 = vmatpush1.msra.mxu0 0.0
    %606 = vmatprep.subr.mxu0 0.0
    %607 = vmatpush1.msra.mxu0 0.0
    %608 = vmatprep.subr.mxu0 0.0
    %609 = vmatpush1.msra.mxu0 0.0
    %610 = vmatprep.subr.mxu0 0.0
    %611 = vmatpush1.msra.mxu0 0.0
    %612 = vmatprep.mubr.f32.mxu0 0.0
    %613 = vmatmul.mubr.f32.gmra.mrb[0].mxu0 %v205
    %v614 = vpop.f32.mrb[0].mxu0
    %v615 = vadd.f32 %v540, %v614
    %v616 = vpop.f32.mrb[0].mxu0
    %617 = vmatprep.mubr.f32.mxu0 0.0
    %618 = vmatmul.mubr.f32.gmra.mrb[0].mxu0 %v190
    %v619 = vpop.f32.mrb[0].mxu0
    %v620 = vadd.f32 %v545, %v619
    %v621 = vpop.f32.mrb[0].mxu0
    %622 = vdwg.mxu0
    %623 = vst [vmem:[#allocation3] sm:$0xff] %v615
    %624 = vst [vmem:[#allocation3 + $0x8] sm:$0x3] %v620
    %v625 = vld [vmem:[%s0 + $0x26] sm:$0x3]
    %v626 = vld [vmem:[#allocation4 + $0x80] sm:$0xff]
    %v627 = vld [vmem:[#allocation4 + $0x88] sm:$0xff]
    %v628 = vld [vmem:[#allocation4 + $0x90] sm:$0xff]
    %v629 = vld [vmem:[#allocation4 + $0x98] sm:$0xff]
    %v630 = vld [vmem:[#allocation4 + $0xa0] sm:$0xff]
    %v631 = vld [vmem:[#allocation4 + $0xa8] sm:$0xff]
    %v632 = vld [vmem:[#allocation4 + $0xb0] sm:$0xff]
    %v633 = vld [vmem:[#allocation4 + $0xb8] sm:$0xff]
    %v634 = vld [vmem:[#allocation4 + $0xc0] sm:$0xff]
    %v635 = vld [vmem:[#allocation4 + $0xc8] sm:$0xff]
    %v636 = vld [vmem:[#allocation4 + $0xd0] sm:$0xff]
    %v637 = vld [vmem:[#allocation4 + $0xd8] sm:$0xff]
    %v638 = vld [vmem:[#allocation4 + $0xe0] sm:$0xff]
    %v639 = vld [vmem:[#allocation4 + $0xe8] sm:$0xff]
    %v640 = vld [vmem:[#allocation4 + $0xf0] sm:$0xff]
    %v641 = vld [vmem:[#allocation4 + $0xf8] sm:$0xff]
    %v642 = vld [vmem:[#allocation3] ss:$5 sm:$0x3]
    %s643 = scalar_lea.vmem [#allocation3], 1
    %v644 = vld [vmem:[%s643] ss:$5 sm:$0x3]
    %s645 = scalar_lea.vmem [#allocation3], 2
    %v646 = vld [vmem:[%s645] ss:$5 sm:$0x3]
    %s647 = scalar_lea.vmem [#allocation3], 3
    %v648 = vld [vmem:[%s647] ss:$5 sm:$0x3]
    %s649 = scalar_lea.vmem [#allocation3], 4
    %v650 = vld [vmem:[%s649] ss:$5 sm:$0x3]
    %v651 = vld [vmem:[#allocation4 + $0x480] sm:$0xff]
    %v652 = vld [vmem:[#allocation4 + $0x488] sm:$0xff]
    %v653 = vld [vmem:[#allocation4 + $0x490] sm:$0xff]
    %v654 = vld [vmem:[#allocation4 + $0x498] sm:$0xff]
    %v655 = vld [vmem:[#allocation4 + $0x4a0] sm:$0xff]
    %v656 = vld [vmem:[#allocation4 + $0x4a8] sm:$0xff]
    %v657 = vld [vmem:[#allocation4 + $0x4b0] sm:$0xff]
    %v658 = vld [vmem:[#allocation4 + $0x4b8] sm:$0xff]
    %v659 = vld [vmem:[#allocation4 + $0x4c0] sm:$0xff]
    %v660 = vld [vmem:[#allocation4 + $0x4c8] sm:$0xff]
    %v661 = vld [vmem:[#allocation4 + $0x4d0] sm:$0xff]
    %v662 = vld [vmem:[#allocation4 + $0x4d8] sm:$0xff]
    %v663 = vld [vmem:[#allocation4 + $0x4e0] sm:$0xff]
    %v664 = vld [vmem:[#allocation4 + $0x4e8] sm:$0xff]
    %v665 = vld [vmem:[#allocation4 + $0x4f0] sm:$0xff]
    %v666 = vld [vmem:[#allocation4 + $0x4f8] sm:$0xff]
    %v667 = vld [vmem:[#allocation4 + $0x500] sm:$0xff]
    %v668 = vld [vmem:[#allocation4 + $0x508] sm:$0xff]
    %v669 = vld [vmem:[#allocation4 + $0x510] sm:$0xff]
    %v670 = vld [vmem:[#allocation4 + $0x518] sm:$0xff]
    %v671 = vld [vmem:[#allocation4 + $0x520] sm:$0xff]
    %v672 = vld [vmem:[#allocation4 + $0x528] sm:$0xff]
    %v673 = vld [vmem:[#allocation4 + $0x530] sm:$0xff]
    %v674 = vld [vmem:[#allocation4 + $0x538] sm:$0xff]
    %v675 = vld [vmem:[#allocation4 + $0x540] sm:$0xff]
    %v676 = vld [vmem:[#allocation4 + $0x548] sm:$0xff]
    %v677 = vld [vmem:[#allocation4 + $0x550] sm:$0xff]
    %v678 = vld [vmem:[#allocation4 + $0x558] sm:$0xff]
    %v679 = vld [vmem:[#allocation4 + $0x560] sm:$0xff]
    %v680 = vld [vmem:[#allocation4 + $0x568] sm:$0xff]
    %v681 = vld [vmem:[#allocation4 + $0x570] sm:$0xff]
    %v682 = vld [vmem:[#allocation4 + $0x578] sm:$0xff]
    %v683 = vld [vmem:[#allocation4 + $0x580] sm:$0xff]
    %v684 = vld [vmem:[#allocation4 + $0x588] sm:$0xff]
    %v685 = vld [vmem:[#allocation4 + $0x590] sm:$0xff]
    %v686 = vld [vmem:[#allocation4 + $0x598] sm:$0xff]
    %v687 = vld [vmem:[#allocation4 + $0x5a0] sm:$0xff]
    %v688 = vld [vmem:[#allocation4 + $0x5a8] sm:$0xff]
    %v689 = vld [vmem:[#allocation4 + $0x5b0] sm:$0xff]
    %v690 = vld [vmem:[#allocation4 + $0x5b8] sm:$0xff]
    %v691 = vld [vmem:[#allocation4 + $0x5c0] sm:$0xff]
    %v692 = vld [vmem:[#allocation4 + $0x5c8] sm:$0xff]
    %v693 = vld [vmem:[#allocation4 + $0x5d0] sm:$0xff]
    %v694 = vld [vmem:[#allocation4 + $0x5d8] sm:$0xff]
    %v695 = vld [vmem:[#allocation4 + $0x5e0] sm:$0xff]
    %v696 = vld [vmem:[#allocation4 + $0x5e8] sm:$0xff]
    %v697 = vld [vmem:[#allocation4 + $0x5f0] sm:$0xff]
    %v698 = vld [vmem:[#allocation4 + $0x5f8] sm:$0xff]
    %v699 = vld [vmem:[#allocation4 + $0x600] sm:$0xff]
    %v700 = vld [vmem:[#allocation4 + $0x608] sm:$0xff]
    %v701 = vld [vmem:[#allocation4 + $0x610] sm:$0xff]
    %v702 = vld [vmem:[#allocation4 + $0x618] sm:$0xff]
    %v703 = vld [vmem:[#allocation4 + $0x620] sm:$0xff]
    %v704 = vld [vmem:[#allocation4 + $0x628] sm:$0xff]
    %v705 = vld [vmem:[#allocation4 + $0x630] sm:$0xff]
    %v706 = vld [vmem:[#allocation4 + $0x638] sm:$0xff]
    %v707 = vld [vmem:[#allocation4 + $0x640] sm:$0xff]
    %v708 = vld [vmem:[#allocation4 + $0x648] sm:$0xff]
    %v709 = vld [vmem:[#allocation4 + $0x650] sm:$0xff]
    %v710 = vld [vmem:[#allocation4 + $0x658] sm:$0xff]
    %v711 = vld [vmem:[#allocation4 + $0x660] sm:$0xff]
    %v712 = vld [vmem:[#allocation4 + $0x668] sm:$0xff]
    %v713 = vld [vmem:[#allocation4 + $0x670] sm:$0xff]
    %v714 = vld [vmem:[#allocation4 + $0x678] sm:$0xff]
    %v715 = vld [vmem:[#allocation4 + $0x680] sm:$0xff]
    %v716 = vld [vmem:[#allocation4 + $0x688] sm:$0xff]
    %v717 = vld [vmem:[#allocation4 + $0x690] sm:$0xff]
    %v718 = vld [vmem:[#allocation4 + $0x698] sm:$0xff]
    %v719 = vld [vmem:[#allocation4 + $0x6a0] sm:$0xff]
    %v720 = vld [vmem:[#allocation4 + $0x6a8] sm:$0xff]
    %v721 = vld [vmem:[#allocation4 + $0x6b0] sm:$0xff]
    %v722 = vld [vmem:[#allocation4 + $0x6b8] sm:$0xff]
    %v723 = vld [vmem:[#allocation4 + $0x6c0] sm:$0xff]
    %v724 = vld [vmem:[#allocation4 + $0x6c8] sm:$0xff]
    %v725 = vld [vmem:[#allocation4 + $0x6d0] sm:$0xff]
    %v726 = vld [vmem:[#allocation4 + $0x6d8] sm:$0xff]
    %v727 = vld [vmem:[#allocation4 + $0x6e0] sm:$0xff]
    %v728 = vld [vmem:[#allocation4 + $0x6e8] sm:$0xff]
    %v729 = vld [vmem:[#allocation4 + $0x6f0] sm:$0xff]
    %v730 = vld [vmem:[#allocation4 + $0x6f8] sm:$0xff]
    %731 = vmatprep.subr.mxu0 0.0
    %732 = vmatpush1.msra.mxu0 %v651
    %733 = vmatprep.subr.mxu0 0.0
    %734 = vmatpush1.msra.mxu0 %v652
    %735 = vmatprep.subr.mxu0 0.0
    %736 = vmatpush1.msra.mxu0 %v653
    %737 = vmatprep.subr.mxu0 0.0
    %738 = vmatpush1.msra.mxu0 %v654
    %739 = vmatprep.subr.mxu0 0.0
    %740 = vmatpush1.msra.mxu0 %v655
    %741 = vmatprep.subr.mxu0 0.0
    %742 = vmatpush1.msra.mxu0 %v656
    %743 = vmatprep.subr.mxu0 0.0
    %744 = vmatpush1.msra.mxu0 %v657
    %745 = vmatprep.subr.mxu0 0.0
    %746 = vmatpush1.msra.mxu0 %v658
    %747 = vmatprep.subr.mxu0 0.0
    %748 = vmatpush1.msra.mxu0 %v659
    %749 = vmatprep.subr.mxu0 0.0
    %750 = vmatpush1.msra.mxu0 %v660
    %751 = vmatprep.subr.mxu0 0.0
    %752 = vmatpush1.msra.mxu0 %v661
    %753 = vmatprep.subr.mxu0 0.0
    %754 = vmatpush1.msra.mxu0 %v662
    %755 = vmatprep.subr.mxu0 0.0
    %756 = vmatpush1.msra.mxu0 %v663
    %757 = vmatprep.subr.mxu0 0.0
    %758 = vmatpush1.msra.mxu0 %v664
    %759 = vmatprep.subr.mxu0 0.0
    %760 = vmatpush1.msra.mxu0 %v665
    %761 = vmatprep.subr.mxu0 0.0
    %762 = vmatpush1.msra.mxu0 %v666
    %763 = vmatprep.subr.mxu0 0.0
    %764 = vmatpush1.msra.mxu0 %v667
    %765 = vmatprep.subr.mxu0 0.0
    %766 = vmatpush1.msra.mxu0 %v668
    %767 = vmatprep.subr.mxu0 0.0
    %768 = vmatpush1.msra.mxu0 %v669
    %769 = vmatprep.subr.mxu0 0.0
    %770 = vmatpush1.msra.mxu0 %v670
    %771 = vmatprep.subr.mxu0 0.0
    %772 = vmatpush1.msra.mxu0 %v671
    %773 = vmatprep.subr.mxu0 0.0
    %774 = vmatpush1.msra.mxu0 %v672
    %775 = vmatprep.subr.mxu0 0.0
    %776 = vmatpush1.msra.mxu0 %v673
    %777 = vmatprep.subr.mxu0 0.0
    %778 = vmatpush1.msra.mxu0 %v674
    %779 = vmatprep.subr.mxu0 0.0
    %780 = vmatpush1.msra.mxu0 %v675
    %781 = vmatprep.subr.mxu0 0.0
    %782 = vmatpush1.msra.mxu0 %v676
    %783 = vmatprep.subr.mxu0 0.0
    %784 = vmatpush1.msra.mxu0 %v677
    %785 = vmatprep.subr.mxu0 0.0
    %786 = vmatpush1.msra.mxu0 %v678
    %787 = vmatprep.subr.mxu0 0.0
    %788 = vmatpush1.msra.mxu0 %v679
    %789 = vmatprep.subr.mxu0 0.0
    %790 = vmatpush1.msra.mxu0 %v680
    %791 = vmatprep.subr.mxu0 0.0
    %792 = vmatpush1.msra.mxu0 %v681
    %793 = vmatprep.subr.mxu0 0.0
    %794 = vmatpush1.msra.mxu0 %v682
    %795 = vmatprep.mubr.f32.mxu0 %v644
    %796 = vmatmul.mubr.f32.gmra.mrb[0].mxu0 %v642
    %v797 = vpop.f32.mrb[0].mxu0
    %v798 = vadd.f32 0.0, %v797
    %v799 = vpop.f32.mrb[0].mxu0
    %800 = vdwg.mxu0
    %801 = vmatprep.subr.mxu0 0.0
    %802 = vmatpush1.msra.mxu0 %v683
    %803 = vmatprep.subr.mxu0 0.0
    %804 = vmatpush1.msra.mxu0 %v684
    %805 = vmatprep.subr.mxu0 0.0
    %806 = vmatpush1.msra.mxu0 %v685
    %807 = vmatprep.subr.mxu0 0.0
    %808 = vmatpush1.msra.mxu0 %v686
    %809 = vmatprep.subr.mxu0 0.0
    %810 = vmatpush1.msra.mxu0 %v687
    %811 = vmatprep.subr.mxu0 0.0
    %812 = vmatpush1.msra.mxu0 %v688
    %813 = vmatprep.subr.mxu0 0.0
    %814 = vmatpush1.msra.mxu0 %v689
    %815 = vmatprep.subr.mxu0 0.0
    %816 = vmatpush1.msra.mxu0 %v690
    %817 = vmatprep.subr.mxu0 0.0
    %818 = vmatpush1.msra.mxu0 %v691
    %819 = vmatprep.subr.mxu0 0.0
    %820 = vmatpush1.msra.mxu0 %v692
    %821 = vmatprep.subr.mxu0 0.0
    %822 = vmatpush1.msra.mxu0 %v693
    %823 = vmatprep.subr.mxu0 0.0
    %824 = vmatpush1.msra.mxu0 %v694
    %825 = vmatprep.subr.mxu0 0.0
    %826 = vmatpush1.msra.mxu0 %v695
    %827 = vmatprep.subr.mxu0 0.0
    %828 = vmatpush1.msra.mxu0 %v696
    %829 = vmatprep.subr.mxu0 0.0
    %830 = vmatpush1.msra.mxu0 %v697
    %831 = vmatprep.subr.mxu0 0.0
    %832 = vmatpush1.msra.mxu0 %v698
    %833 = vmatprep.subr.mxu0 0.0
    %834 = vmatpush1.msra.mxu0 %v699
    %835 = vmatprep.subr.mxu0 0.0
    %836 = vmatpush1.msra.mxu0 %v700
    %837 = vmatprep.subr.mxu0 0.0
    %838 = vmatpush1.msra.mxu0 %v701
    %839 = vmatprep.subr.mxu0 0.0
    %840 = vmatpush1.msra.mxu0 %v702
    %841 = vmatprep.subr.mxu0 0.0
    %842 = vmatpush1.msra.mxu0 %v703
    %843 = vmatprep.subr.mxu0 0.0
    %844 = vmatpush1.msra.mxu0 %v704
    %845 = vmatprep.subr.mxu0 0.0
    %846 = vmatpush1.msra.mxu0 %v705
    %847 = vmatprep.subr.mxu0 0.0
    %848 = vmatpush1.msra.mxu0 %v706
    %849 = vmatprep.subr.mxu0 0.0
    %850 = vmatpush1.msra.mxu0 %v707
    %851 = vmatprep.subr.mxu0 0.0
    %852 = vmatpush1.msra.mxu0 %v708
    %853 = vmatprep.subr.mxu0 0.0
    %854 = vmatpush1.msra.mxu0 %v709
    %855 = vmatprep.subr.mxu0 0.0
    %856 = vmatpush1.msra.mxu0 %v710
    %857 = vmatprep.subr.mxu0 0.0
    %858 = vmatpush1.msra.mxu0 %v711
    %859 = vmatprep.subr.mxu0 0.0
    %860 = vmatpush1.msra.mxu0 %v712
    %861 = vmatprep.subr.mxu0 0.0
    %862 = vmatpush1.msra.mxu0 %v713
    %863 = vmatprep.subr.mxu0 0.0
    %864 = vmatpush1.msra.mxu0 %v714
    %865 = vmatprep.mubr.f32.mxu0 %v648
    %866 = vmatmul.mubr.f32.gmra.mrb[0].mxu0 %v646
    %v867 = vpop.f32.mrb[0].mxu0
    %v868 = vadd.f32 %v798, %v867
    %v869 = vpop.f32.mrb[0].mxu0
    %870 = vdwg.mxu0
    %871 = vmatprep.subr.mxu0 0.0
    %872 = vmatpush1.msra.mxu0 %v715
    %873 = vmatprep.subr.mxu0 0.0
    %874 = vmatpush1.msra.mxu0 %v716
    %875 = vmatprep.subr.mxu0 0.0
    %876 = vmatpush1.msra.mxu0 %v717
    %877 = vmatprep.subr.mxu0 0.0
    %878 = vmatpush1.msra.mxu0 %v718
    %879 = vmatprep.subr.mxu0 0.0
    %880 = vmatpush1.msra.mxu0 %v719
    %881 = vmatprep.subr.mxu0 0.0
    %882 = vmatpush1.msra.mxu0 %v720
    %883 = vmatprep.subr.mxu0 0.0
    %884 = vmatpush1.msra.mxu0 %v721
    %885 = vmatprep.subr.mxu0 0.0
    %886 = vmatpush1.msra.mxu0 %v722
    %887 = vmatprep.subr.mxu0 0.0
    %888 = vmatpush1.msra.mxu0 %v723
    %889 = vmatprep.subr.mxu0 0.0
    %890 = vmatpush1.msra.mxu0 %v724
    %891 = vmatprep.subr.mxu0 0.0
    %892 = vmatpush1.msra.mxu0 %v725
    %893 = vmatprep.subr.mxu0 0.0
    %894 = vmatpush1.msra.mxu0 %v726
    %895 = vmatprep.subr.mxu0 0.0
    %896 = vmatpush1.msra.mxu0 %v727
    %897 = vmatprep.subr.mxu0 0.0
    %898 = vmatpush1.msra.mxu0 %v728
    %899 = vmatprep.subr.mxu0 0.0
    %900 = vmatpush1.msra.mxu0 %v729
    %901 = vmatprep.subr.mxu0 0.0
    %902 = vmatpush1.msra.mxu0 %v730
    %903 = vmatprep.subr.mxu0 0.0
    %904 = vmatpush1.msra.mxu0 0.0
    %905 = vmatprep.subr.mxu0 0.0
    %906 = vmatpush1.msra.mxu0 0.0
    %907 = vmatprep.subr.mxu0 0.0
    %908 = vmatpush1.msra.mxu0 0.0
    %909 = vmatprep.subr.mxu0 0.0
    %910 = vmatpush1.msra.mxu0 0.0
    %911 = vmatprep.subr.mxu0 0.0
    %912 = vmatpush1.msra.mxu0 0.0
    %913 = vmatprep.subr.mxu0 0.0
    %914 = vmatpush1.msra.mxu0 0.0
    %915 = vmatprep.subr.mxu0 0.0
    %916 = vmatpush1.msra.mxu0 0.0
    %917 = vmatprep.subr.mxu0 0.0
    %918 = vmatpush1.msra.mxu0 0.0
    %919 = vmatprep.subr.mxu0 0.0
    %920 = vmatpush1.msra.mxu0 0.0
    %921 = vmatprep.subr.mxu0 0.0
    %922 = vmatpush1.msra.mxu0 0.0
    %923 = vmatprep.subr.mxu0 0.0
    %924 = vmatpush1.msra.mxu0 0.0
    %925 = vmatprep.subr.mxu0 0.0
    %926 = vmatpush1.msra.mxu0 0.0
    %927 = vmatprep.subr.mxu0 0.0
    %928 = vmatpush1.msra.mxu0 0.0
    %929 = vmatprep.subr.mxu0 0.0
    %930 = vmatpush1.msra.mxu0 0.0
    %931 = vmatprep.subr.mxu0 0.0
    %932 = vmatpush1.msra.mxu0 0.0
    %933 = vmatprep.subr.mxu0 0.0
    %934 = vmatpush1.msra.mxu0 0.0
    %935 = vmatprep.mubr.f32.mxu0 0.0
    %936 = vmatmul.mubr.f32.gmra.mrb[0].mxu0 %v650
    %v937 = vpop.f32.mrb[0].mxu0
    %v938 = vadd.f32 %v868, %v937
    %v939 = vpop.f32.mrb[0].mxu0
    %940 = vdwg.mxu0
    %941 = vmatprep.subr.mxu0 0.0
    %942 = vmatpush1.msra.mxu0 %v626
    %943 = vmatprep.subr.mxu0 0.0
    %944 = vmatpush1.msra.mxu0 %v627
    %945 = vmatprep.subr.mxu0 0.0
    %946 = vmatpush1.msra.mxu0 %v628
    %947 = vmatprep.subr.mxu0 0.0
    %948 = vmatpush1.msra.mxu0 %v629
    %949 = vmatprep.subr.mxu0 0.0
    %950 = vmatpush1.msra.mxu0 %v630
    %951 = vmatprep.subr.mxu0 0.0
    %952 = vmatpush1.msra.mxu0 %v631
    %953 = vmatprep.subr.mxu0 0.0
    %954 = vmatpush1.msra.mxu0 %v632
    %955 = vmatprep.subr.mxu0 0.0
    %956 = vmatpush1.msra.mxu0 %v633
    %957 = vmatprep.subr.mxu0 0.0
    %958 = vmatpush1.msra.mxu0 %v634
    %959 = vmatprep.subr.mxu0 0.0
    %960 = vmatpush1.msra.mxu0 %v635
    %961 = vmatprep.subr.mxu0 0.0
    %962 = vmatpush1.msra.mxu0 %v636
    %963 = vmatprep.subr.mxu0 0.0
    %964 = vmatpush1.msra.mxu0 %v637
    %965 = vmatprep.subr.mxu0 0.0
    %966 = vmatpush1.msra.mxu0 %v638
    %967 = vmatprep.subr.mxu0 0.0
    %968 = vmatpush1.msra.mxu0 %v639
    %969 = vmatprep.subr.mxu0 0.0
    %970 = vmatpush1.msra.mxu0 %v640
    %971 = vmatprep.subr.mxu0 0.0
    %972 = vmatpush1.msra.mxu0 %v641
    %973 = vmatprep.subr.mxu0 0.0
    %974 = vmatpush1.msra.mxu0 0.0
    %975 = vmatprep.subr.mxu0 0.0
    %976 = vmatpush1.msra.mxu0 0.0
    %977 = vmatprep.subr.mxu0 0.0
    %978 = vmatpush1.msra.mxu0 0.0
    %979 = vmatprep.subr.mxu0 0.0
    %980 = vmatpush1.msra.mxu0 0.0
    %981 = vmatprep.subr.mxu0 0.0
    %982 = vmatpush1.msra.mxu0 0.0
    %983 = vmatprep.subr.mxu0 0.0
    %984 = vmatpush1.msra.mxu0 0.0
    %985 = vmatprep.subr.mxu0 0.0
    %986 = vmatpush1.msra.mxu0 0.0
    %987 = vmatprep.subr.mxu0 0.0
    %988 = vmatpush1.msra.mxu0 0.0
    %989 = vmatprep.subr.mxu0 0.0
    %990 = vmatpush1.msra.mxu0 0.0
    %991 = vmatprep.subr.mxu0 0.0
    %992 = vmatpush1.msra.mxu0 0.0
    %993 = vmatprep.subr.mxu0 0.0
    %994 = vmatpush1.msra.mxu0 0.0
    %995 = vmatprep.subr.mxu0 0.0
    %996 = vmatpush1.msra.mxu0 0.0
    %997 = vmatprep.subr.mxu0 0.0
    %998 = vmatpush1.msra.mxu0 0.0
    %999 = vmatprep.subr.mxu0 0.0
    %1000 = vmatpush1.msra.mxu0 0.0
    %1001 = vmatprep.subr.mxu0 0.0
    %1002 = vmatpush1.msra.mxu0 0.0
    %1003 = vmatprep.subr.mxu0 0.0
    %1004 = vmatpush1.msra.mxu0 0.0
    %1005 = vmatprep.mubr.f32.mxu0 0.0
    %1006 = vmatmul.mubr.f32.gmra.mrb[0].mxu0 %v625
    %v1007 = vpop.f32.mrb[0].mxu0
    %v1008 = vadd.f32 %v938, %v1007
    %v1009 = vpop.f32.mrb[0].mxu0
    %1010 = vdwg.mxu0
    %v1011 = vld [vmem:[%s2 + $0x2] sm:$0x1]
    %v1012 = vlaneseq
    %v1013 = vshrl.u32 %v1012, 7
    %v1014 = vsub.s32 0, %v1013
    %v1015 = vrot.slane %v1011, %v1014
    %v1016 = vadd.f32 %v1008, %v1015
    %1017 = vst [vmem:[#allocation7] sm:$0x3] %v1016
    // Predicated region
    $region18: #{_fwd.1} parent=1 // pred_check
      _
    $region19: #{_fwd.1} parent=1 // pred_check_branch
      %1019 = sbr.rel (0) target = $region21
    $region20: #{_fwd.1} parent=1 // pred_region
      %s1021 = ssub.s32 32, 32
      %1022 = vsyncadd [#allocation6], %s1021
      %s1024 = sshll.u32 [#allocation7], 4
      %s1025 = int_to_ptr.vmem [resolvable:$true] %s1024
      %1027 = dma.vmem_to_hbm [thread:$0]  %s1025, 32, %s3, [#allocation6]
    $region21: #{_fwd.1} parent=1 // pred_fallthru
      _
    // Predicated region
    $region22: #{_fwd.1} parent=1 // pred_check
      _
    $region23: #{_fwd.1} parent=1 // pred_check_branch
      %1029 = sbr.rel (0) target = $region25
    $region24: #{_fwd.1} parent=1 // pred_region
      %1030 = dma.done [#allocation6], 32
    $region25: #{_fwd.1} parent=1 // pred_fallthru
      _
    %1031 = vsyncpa [#allocation5], 1
    %1032 = vsyncpa [#allocation6], 1

</llo_original>
